<compile_context>
chip_gen: v6e
topology: v6e:2x2x1
jax: 0.10.0
libtpu: 0.0.40
codegen_flags: <defaults>
</compile_context>

<pallas_src>
import functools

import jax
import jax.numpy as jnp
from jax import lax
from jax.experimental import pallas as pl
from jax.experimental.pallas import tpu as pltpu


def _rep_head_kernel(x_ref, halo_ref, w_ref, b_ref, out_ref, win_ref):
    # x_ref   : (1, 1, R, K)    bf16  main tile, R = TR*W flattened pixel rows
    # halo_ref: (1, 1, 2W, K)   bf16  rows [0:W)  = image row above the tile,
    #                                 rows [W:2W) = image row below (zeros at borders)
    # w_ref   : (3, K, Cout)    bf16  folded (3x3 o 1x1) weights, dy-major
    # b_ref   : (1, Cout)       f32   1x1-conv bias
    # out_ref : (1, Cout, R)    f32   channel-major (NCHW) output block
    # win_ref : (R + 2W, K)     bf16  VMEM scratch: dy-halo'd window
    R = x_ref.shape[2]
    W = halo_ref.shape[2] // 2

    # Assemble the halo'd window in VMEM (extra VMEM copy only; no HBM
    # duplication).  Offsets 0, W, W+R are sublane-aligned whenever W is a
    # multiple of 16 (bf16 packing); misaligned W still lowers correctly,
    # just with a relayout.
    win_ref[0:W, :] = halo_ref[0, 0, 0:W, :]
    win_ref[W:W + R, :] = x_ref[0, 0]
    win_ref[W + R:, :] = halo_ref[0, 0, W:, :]

    # Three contiguous row-slice MXU matmuls (dy = 0, 1, 2), f32 accumulation.
    acc = jnp.dot(win_ref[0:R, :], w_ref[0],
                  preferred_element_type=jnp.float32)
    acc = acc + jnp.dot(win_ref[W:W + R, :], w_ref[1],
                        preferred_element_type=jnp.float32)
    acc = acc + jnp.dot(win_ref[2 * W:2 * W + R, :], w_ref[2],
                        preferred_element_type=jnp.float32)
    acc = acc + b_ref[...]

    # XLU transpose -> channel-major tile so the output is already NCHW.
    out_ref[0] = jnp.transpose(acc).astype(out_ref.dtype)


def _pick_row_tile(H, W, B, target_flat_rows, vmem_budget_bytes, K, Cout):
    """Pick TR (a divisor of H): largest tile within the row/VMEM budget,
    preferring lane-dense output blocks (TR*W % 128 == 0) and an even, >= 2
    total tile count so both v7x TensorCores get work."""
    per_row = 6 * K + 16 * Cout          # VMEM bytes per flattened output row
    rows_cap = max(W, vmem_budget_bytes // per_row)
    target = max(W, min(target_flat_rows, rows_cap))
    divisors = [d for d in range(1, H + 1) if H % d == 0]
    fit = [d for d in divisors if d * W <= target] or [1]
    # TODO(synk): support H with no reasonable divisor (ragged last tile via
    # pl.when-masked rows) instead of degrading towards TR == 1.

    def score(tr):
        nt = H // tr
        lane_dense = (tr * W) % 128 == 0
        balanced = (B * nt) % 2 == 0 or (B * nt) >= 4
        return (lane_dense, balanced, tr)

    return max(fit, key=score)


def representation_head(x_nchw, w1, w2, b2, *, block_rows=1024):
    """Fused forward of RepresentationHead.

    x_nchw : (B, Cin, H, W)      f32, NCHW (PyTorch convention)
    w1     : (Cmid, Cin, 3, 3)   3x3 conv weight (OIHW), no bias
    w2     : (Cout, Cmid, 1, 1)  1x1 conv weight (OIHW)
    b2     : (Cout,)             1x1 conv bias
    returns: (B, Cout, H, W)     f32, NCHW
    """
    B, Cin, H, W = x_nchw.shape
    Cmid = w1.shape[0]
    Cout = w2.shape[0]
    K = 3 * Cin

    # ---- fold the 1x1 conv into the 3x3 conv (in f32), cast to bf16 --------
    w2_mat = w2.reshape(Cout, Cmid)
    # w_eff[dy, dx, cin, cout] = sum_cm w1[cm, cin, dy, dx] * w2[cout, cm]
    w_eff = jnp.einsum('mihw,om->hwio', w1, w2_mat)              # (3,3,Cin,Cout)
    w_fold = w_eff.reshape(3, K, Cout).astype(jnp.bfloat16)
    b_row = b2.reshape(1, Cout).astype(jnp.float32)

    # ---- activation slab: NHWC bf16, dx folded into channels (K = 3*Cin) ---
    x_nhwc = jnp.transpose(x_nchw, (0, 2, 3, 1)).astype(jnp.bfloat16)
    x_wpad = jnp.pad(x_nhwc, ((0, 0), (0, 0), (1, 1), (0, 0)))   # pad W only
    xw = jnp.concatenate(
        [x_wpad[:, :, 0:W], x_wpad[:, :, 1:W + 1], x_wpad[:, :, 2:W + 2]],
        axis=-1)                                                 # (B, H, W, K)

    # ---- row tiling; NO halo duplication of the slab ------------------------
    TR = _pick_row_tile(H, W, B, block_rows, 20 << 20, K, Cout)
    nt = H // TR
    x_tiles = xw.reshape(B, nt, TR * W, K)                       # free bitcast

    # Tiny per-tile halo rows (previous / next image row; zeros at the image
    # top/bottom).  Only 2/TR of the slab is duplicated here.
    zrow = jnp.zeros((B, 1, W, K), jnp.bfloat16)
    if nt > 1:
        tops = jnp.concatenate([zrow, xw[:, TR - 1:H - 1:TR]], axis=1)
        bots = jnp.concatenate([xw[:, TR:H:TR], zrow], axis=1)
    else:
        tops, bots = zrow, zrow
    halos = jnp.concatenate([tops, bots], axis=2)                # (B, nt, 2W, K)

    # ---- VMEM sizing ---------------------------------------------------------
    est = (2 * (TR * W * K * 2 + 2 * W * K * 2 + Cout * TR * W * 4)  # dbl-buffered in/halo/out
           + (TR + 2) * W * K * 2                                    # window scratch
           + 2 * TR * W * Cout * 4                                   # staged f32 accumulator
           + 3 * K * Cout * 2 + Cout * 4)                            # weights + bias
    vmem_limit = int(min(56 << 20, max(32 << 20, 2 * est)))

    out_flat = pl.pallas_call(
        _rep_head_kernel,
        out_shape=jax.ShapeDtypeStruct((B, Cout, H * W), jnp.float32),
        grid_spec=pltpu.PrefetchScalarGridSpec(
            num_scalar_prefetch=0,
            grid=(B, nt),
            in_specs=[
                pl.BlockSpec((1, 1, TR * W, K), lambda b, t: (b, t, 0, 0)),
                pl.BlockSpec((1, 1, 2 * W, K), lambda b, t: (b, t, 0, 0)),
                pl.BlockSpec((3, K, Cout), lambda b, t: (0, 0, 0)),
                pl.BlockSpec((1, Cout), lambda b, t: (0, 0)),
            ],
            out_specs=pl.BlockSpec((1, Cout, TR * W), lambda b, t: (b, 0, t)),
            scratch_shapes=[pltpu.VMEM(((TR + 2) * W, K), jnp.bfloat16)],
        ),
        compiler_params=pltpu.CompilerParams(
            dimension_semantics=("parallel", "parallel"),
            vmem_limit_bytes=vmem_limit),
    )(x_tiles, halos, w_fold, b_row)

    # Splitting the minor dim (H*W) -> (H, W) is a layout-preserving bitcast.
    return out_flat.reshape(B, Cout, H, W)


def _reference(x_nchw, w1, w2, b2):
    """Pure-JAX f32 reference matching PyTorch semantics (NCHW convs)."""
    dn = lax.conv_dimension_numbers(x_nchw.shape, w1.shape,
                                    ("NCHW", "OIHW", "NCHW"))
    h = lax.conv_general_dilated(x_nchw, w1, window_strides=(1, 1),
                                 padding=((1, 1), (1, 1)),
                                 dimension_numbers=dn)
    dn2 = lax.conv_dimension_numbers(h.shape, w2.shape,
                                     ("NCHW", "OIHW", "NCHW"))
    y = lax.conv_general_dilated(h, w2, window_strides=(1, 1),
                                 padding=((0, 0), (0, 0)),
                                 dimension_numbers=dn2)
    return y + b2.reshape(1, -1, 1, 1)


if __name__ == "__main__":
    # Small shapes consistent with the module (num_classes -> Cin,
    # output_channel -> Cmid == Cout), scaled down but lane-friendly.
    B, Cin, H, W = 2, 32, 16, 16
    Cmid = Cout = 128

    key = jax.random.PRNGKey(0)
    kx, kw1, kw2, kb2 = jax.random.split(key, 4)

    x = jax.random.normal(kx, (B, Cin, H, W), dtype=jnp.float32)
    w1 = jax.random.normal(kw1, (Cmid, Cin, 3, 3), dtype=jnp.float32) * 0.1
    w2 = jax.random.normal(kw2, (Cout, Cmid, 1, 1), dtype=jnp.float32) * 0.1
    b2 = jax.random.normal(kb2, (Cout,), dtype=jnp.float32) * 0.1

    # block_rows=128 forces 2 row-tiles per image at this size so the halo
    # path, both grid axes, and the lane-dense 128-wide output blocks are
    # exercised (TR*W == 128).
    fwd = jax.jit(functools.partial(representation_head, block_rows=128))
    out = jax.block_until_ready(fwd(x, w1, w2, b2))

    ref = jax.block_until_ready(_reference(x, w1, w2, b2))
    assert out.shape == (B, Cout, H, W)
    err = float(jnp.max(jnp.abs(out - ref)))
    # bf16 matmul operands with f32 accumulation -> ~0.5% relative error.
    assert bool(jnp.allclose(out, ref, atol=5e-2, rtol=2e-2)), (
        "max abs err = %f" % err)

    print("KERNEL_OK")
</pallas_src>

<mosaic_0001>
module attributes {stable_mosaic.version = 11 : i64} {
  func.func @_rep_head_kernel(%arg0: i32, %arg1: i32, %arg2: memref<1x1x128x96xbf16, #tpu.memory_space<vmem>>, %arg3: memref<1x1x32x96xbf16, #tpu.memory_space<vmem>>, %arg4: memref<3x96x128xbf16, #tpu.memory_space<vmem>>, %arg5: memref<1x128xf32, #tpu.memory_space<vmem>>, %arg6: memref<1x128x128xf32, #tpu.memory_space<vmem>>, %arg7: memref<160x96xbf16, #tpu.memory_space<vmem>>) attributes {dimension_semantics = [#tpu.dimension_semantics<parallel>, #tpu.dimension_semantics<parallel>], iteration_bounds = array<i64: 2, 2>, scalar_prefetch = 0 : i64, scratch_operands = 1 : i64, tpu.core_type = #tpu.core_type<tc>, window_params = [{transform_indices = @transform_0, window_bounds = array<i64: 1, 1, 128, 96>}, {transform_indices = @transform_1, window_bounds = array<i64: 1, 1, 32, 96>}, {pipeline_mode = #tpu.pipeline_mode<synchronous>, transform_indices = @transform_2, window_bounds = array<i64: 3, 96, 128>}, {pipeline_mode = #tpu.pipeline_mode<synchronous>, transform_indices = @transform_3, window_bounds = array<i64: 1, 128>}, {transform_indices = @transform_4, window_bounds = array<i64: 1, 128, 128>}]} {
    %c0 = arith.constant 0 : index
    %c0_0 = arith.constant 0 : index
    %c0_1 = arith.constant 0 : index
    %c0_2 = arith.constant 0 : index
    %0 = vector.load %arg3[%c0, %c0_0, %c0_1, %c0_2] : memref<1x1x32x96xbf16, #tpu.memory_space<vmem>>, vector<1x1x16x96xbf16>
    %1 = vector.shape_cast %0 : vector<1x1x16x96xbf16> to vector<16x96xbf16>
    %c0_3 = arith.constant 0 : index
    %c0_4 = arith.constant 0 : index
    %2 = vector.load %arg7[%c0_3, %c0_4] : memref<160x96xbf16, #tpu.memory_space<vmem>>, vector<16x96xbf16>
    tpu.vector_store %arg7[%c0_3, %c0_4], %1 {strides = array<i32>} : memref<160x96xbf16, #tpu.memory_space<vmem>>, vector<16x96xbf16>,
    %c0_5 = arith.constant 0 : index
    %c0_6 = arith.constant 0 : index
    %c0_7 = arith.constant 0 : index
    %c0_8 = arith.constant 0 : index
    %3 = vector.load %arg2[%c0_5, %c0_6, %c0_7, %c0_8] : memref<1x1x128x96xbf16, #tpu.memory_space<vmem>>, vector<1x1x128x96xbf16>
    %4 = vector.shape_cast %3 : vector<1x1x128x96xbf16> to vector<128x96xbf16>
    %c16 = arith.constant 16 : index
    %c0_9 = arith.constant 0 : index
    %5 = vector.load %arg7[%c16, %c0_9] : memref<160x96xbf16, #tpu.memory_space<vmem>>, vector<128x96xbf16>
    tpu.vector_store %arg7[%c16, %c0_9], %4 {strides = array<i32>} : memref<160x96xbf16, #tpu.memory_space<vmem>>, vector<128x96xbf16>,
    %c0_10 = arith.constant 0 : index
    %c0_11 = arith.constant 0 : index
    %c16_12 = arith.constant 16 : index
    %c0_13 = arith.constant 0 : index
    %6 = vector.load %arg3[%c0_10, %c0_11, %c16_12, %c0_13] : memref<1x1x32x96xbf16, #tpu.memory_space<vmem>>, vector<1x1x16x96xbf16>
    %7 = vector.shape_cast %6 : vector<1x1x16x96xbf16> to vector<16x96xbf16>
    %c144 = arith.constant 144 : index
    %c0_14 = arith.constant 0 : index
    %8 = vector.load %arg7[%c144, %c0_14] : memref<160x96xbf16, #tpu.memory_space<vmem>>, vector<16x96xbf16>
    tpu.vector_store %arg7[%c144, %c0_14], %7 {strides = array<i32>} : memref<160x96xbf16, #tpu.memory_space<vmem>>, vector<16x96xbf16>,
    %c0_15 = arith.constant 0 : index
    %c0_16 = arith.constant 0 : index
    %9 = vector.load %arg7[%c0_15, %c0_16] : memref<160x96xbf16, #tpu.memory_space<vmem>>, vector<128x96xbf16>
    %c0_17 = arith.constant 0 : index
    %c0_18 = arith.constant 0 : index
    %c0_19 = arith.constant 0 : index
    %10 = vector.load %arg4[%c0_17, %c0_18, %c0_19] : memref<3x96x128xbf16, #tpu.memory_space<vmem>>, vector<1x96x128xbf16>
    %11 = vector.shape_cast %10 : vector<1x96x128xbf16> to vector<96x128xbf16>
    %cst = arith.constant dense<0.000000e+00> : vector<128x128xf32>
    %12 = tpu.matmul %9, %11, %cst {dimension_numbers = #tpu.dot_dimension_numbers<[1], [0], [0], [1], [0, 0, 1, 1], [], []>} : vector<128x96xbf16>, vector<96x128xbf16>, vector<128x128xf32> -> vector<128x128xf32>
    %c16_20 = arith.constant 16 : index
    %c0_21 = arith.constant 0 : index
    %13 = vector.load %arg7[%c16_20, %c0_21] : memref<160x96xbf16, #tpu.memory_space<vmem>>, vector<128x96xbf16>
    %c1 = arith.constant 1 : index
    %c0_22 = arith.constant 0 : index
    %c0_23 = arith.constant 0 : index
    %14 = vector.load %arg4[%c1, %c0_22, %c0_23] : memref<3x96x128xbf16, #tpu.memory_space<vmem>>, vector<1x96x128xbf16>
    %15 = vector.shape_cast %14 : vector<1x96x128xbf16> to vector<96x128xbf16>
    %cst_24 = arith.constant dense<0.000000e+00> : vector<128x128xf32>
    %16 = tpu.matmul %13, %15, %cst_24 {dimension_numbers = #tpu.dot_dimension_numbers<[1], [0], [0], [1], [0, 0, 1, 1], [], []>} : vector<128x96xbf16>, vector<96x128xbf16>, vector<128x128xf32> -> vector<128x128xf32>
    %17 = arith.addf %12, %16 : vector<128x128xf32>
    %c32 = arith.constant 32 : index
    %c0_25 = arith.constant 0 : index
    %18 = vector.load %arg7[%c32, %c0_25] : memref<160x96xbf16, #tpu.memory_space<vmem>>, vector<128x96xbf16>
    %c2 = arith.constant 2 : index
    %c0_26 = arith.constant 0 : index
    %c0_27 = arith.constant 0 : index
    %19 = vector.load %arg4[%c2, %c0_26, %c0_27] : memref<3x96x128xbf16, #tpu.memory_space<vmem>>, vector<1x96x128xbf16>
    %20 = vector.shape_cast %19 : vector<1x96x128xbf16> to vector<96x128xbf16>
    %cst_28 = arith.constant dense<0.000000e+00> : vector<128x128xf32>
    %21 = tpu.matmul %18, %20, %cst_28 {dimension_numbers = #tpu.dot_dimension_numbers<[1], [0], [0], [1], [0, 0, 1, 1], [], []>} : vector<128x96xbf16>, vector<96x128xbf16>, vector<128x128xf32> -> vector<128x128xf32>
    %22 = arith.addf %17, %21 : vector<128x128xf32>
    %c0_29 = arith.constant 0 : index
    %c0_30 = arith.constant 0 : index
    %23 = vector.load %arg5[%c0_29, %c0_30] : memref<1x128xf32, #tpu.memory_space<vmem>>, vector<1x128xf32>
    %24 = vector.broadcast %23 : vector<1x128xf32> to vector<128x128xf32>
    %25 = arith.addf %22, %24 : vector<128x128xf32>
    %26 = tpu.transpose %25, [1, 0] : vector<128x128xf32> -> vector<128x128xf32>
    %c0_31 = arith.constant 0 : index
    %c0_32 = arith.constant 0 : index
    %c0_33 = arith.constant 0 : index
    %27 = vector.load %arg6[%c0_31, %c0_32, %c0_33] : memref<1x128x128xf32, #tpu.memory_space<vmem>>, vector<1x128x128xf32>
    %28 = vector.shape_cast %27 : vector<1x128x128xf32> to vector<128x128xf32>
    %29 = vector.shape_cast %26 : vector<128x128xf32> to vector<1x128x128xf32>
    tpu.vector_store %arg6[%c0_31, %c0_32, %c0_33], %29 {strides = array<i32>} : memref<1x128x128xf32, #tpu.memory_space<vmem>>, vector<1x128x128xf32>,
    return
  }
  func.func @transform_0(%arg0: i32, %arg1: i32) -> (i32, i32, i32, i32) {
    %c0_i32 = arith.constant 0 : i32
    %c0_i32_0 = arith.constant 0 : i32
    %c0_i32_1 = arith.constant 0 : i32
    return %arg0, %arg1, %c0_i32, %c0_i32_0 : i32, i32, i32, i32
  }
  func.func @transform_1(%arg0: i32, %arg1: i32) -> (i32, i32, i32, i32) {
    %c0_i32 = arith.constant 0 : i32
    %c0_i32_0 = arith.constant 0 : i32
    %c0_i32_1 = arith.constant 0 : i32
    return %arg0, %arg1, %c0_i32, %c0_i32_0 : i32, i32, i32, i32
  }
  func.func @transform_2(%arg0: i32, %arg1: i32) -> (i32, i32, i32) {
    %c0_i32 = arith.constant 0 : i32
    %c0_i32_0 = arith.constant 0 : i32
    %c0_i32_1 = arith.constant 0 : i32
    %c0_i32_2 = arith.constant 0 : i32
    return %c0_i32, %c0_i32_0, %c0_i32_1 : i32, i32, i32
  }
  func.func @transform_3(%arg0: i32, %arg1: i32) -> (i32, i32) {
    %c0_i32 = arith.constant 0 : i32
    %c0_i32_0 = arith.constant 0 : i32
    %c0_i32_1 = arith.constant 0 : i32
    return %c0_i32, %c0_i32_0 : i32, i32
  }
  func.func @transform_4(%arg0: i32, %arg1: i32) -> (i32, i32, i32) {
    %c0_i32 = arith.constant 0 : i32
    %c0_i32_0 = arith.constant 0 : i32
    return %arg0, %c0_i32, %arg1 : i32, i32, i32
  }
}

</mosaic_0001>

<llo_original>
// kernel: representation_head.1
$region0: #{representation_head.1}
  #allocation0 [shape = 'u32[]', space=smem, size = 0x4, offset = 0x4, fixed_abs, tag = 'smem constant byte address 0x4 - core index']
  #allocation1 [shape = 'u32[144,128]{1,0:T(1,128)}', space=vmem, size = 0x12000, scoped, tag = 'internal scratch']
  #allocation2 [shape = 'bf16[160,96]{1,0:T(8,128)(2,1)}', space=vmem, size = 0xa000, scoped, tag = 'scratch operand']
  %s0 = inlined_call_operand.vmem [shape: bf16[2,2,128,96], index: 0, kind: input, shape index: {}]
  %s1 = inlined_call_operand.vmem [shape: bf16[2,2,32,96], index: 1, kind: input, shape index: {}]
  %s2 = inlined_call_operand.vmem [shape: bf16[3,96,128], index: 2, kind: input, shape index: {}]
  %s3 = inlined_call_operand.vmem [shape: f32[1,128], index: 3, kind: input, shape index: {}]
  %s4 = inlined_call_operand.vmem [shape: f32[2,128,256], index: 4, kind: output, shape index: {}]
  %s5 = sld [smem:[#allocation0]]
  $region83: #{representation_head.1} parent=0
    _
  %s7 = ssub.s32 1, %s5
  %s8 = scalar_select 0, %s7, %s5
  $region1: #{representation_head.1} parent=0
    #allocation3 [shape = 'u8[131072]{0}', space=vmem, size = 0x20000, scoped, tag = 'output window, operand 0']
    loop: start=0, step=1, limit=6
    $region2: #{representation_head.1} parent=1 // loop_pre_header
      _
    $region3: #{representation_head.1} parent=1 // loop_header
      %s10 = sphi 0, %s14
      %p11 = scmp.ge.s32.totalorder %s10, 6
      %s17 = sphi 0, %s29
      %s18 = sphi 0, %s25
      %s19 = sphi 0, %s17
      %s20 = sphi 0, %s18
      %s21 = sphi 0, %s19
      %s22 = sphi 0, %s20
      %s34 = sphi 0, %s36
      %s37 = sphi 0, %s34
      %s38 = sphi 0, %s37
      %s54 = sphi 0, %s38
      %s62 = sphi 0, %s64
      %s65 = sphi 0, %s62
      %s66 = sphi 0, %s65
      %s82 = sphi 0, %s66
      %s86 = sphi 0, %s86
      %s88 = sphi 0, %s86
      %s89 = sphi 0, %s88
      %s103 = sphi 0, %s89
      %s107 = sphi 0, %s107
      %s109 = sphi 0, %s107
      %s110 = sphi 0, %s109
      %s124 = sphi 0, %s110
      %s132 = sphi 0, %s134
      %s135 = sphi 0, %s132
      %s136 = sphi 0, %s135
      %s152 = sphi 0, %s136
    $region4: #{representation_head.1} parent=1 // loop_header_branch
      %13 = sbr.rel (%p11) target = $region8
    $region5: #{representation_head.1} parent=1 // loop_body
      %s15 = ssub.s32 %s10, 1
      %s16 = ssub.s32 %s10, 2
      %s23 = sadd.s32 1, %s18
      %p24 = scmp.ge.s32.totalorder %s23, 2
      %s25 = scalar_select %p24, 0, %s23
      %s26 = sadd.s32 1, %s17
      %s27 = scalar_select %p24, %s26, %s17
      %p28 = scmp.ge.s32.totalorder %s27, 2
      %s29 = scalar_select %p28, 0, %s27
      %s30 = ssub.s32 %s17, %s29
      %s31 = ssub.s32 %s18, %s25
      %s32 = sor.u32 %s30, %s31
      %p33 = scmp.eq.s32.totalorder %s32, 0
      %s35 = sadd.s32 %s34, 1
      %s36 = scalar_select %p33, %s34, %s35
      %p39 = pneg %p33
      %p40 = scmp.eq.s32.totalorder %s10, 3
      %p41 = por %p39, %p40
      %p42 = scmp.ne.s32.totalorder %s34, %s37
      %p43 = scmp.eq.s32.totalorder %s10, 0
      %p44 = por %p42, %p43
      %p45 = scmp.ne.s32.totalorder %s34, %s37
      %p46 = scmp.eq.s32.totalorder %s15, 3
      %p47 = por %p45, %p46
      %p48 = scmp.ne.s32.totalorder %s37, %s38
      %p49 = scmp.eq.s32.totalorder %s15, 0
      %p50 = por %p48, %p49
      %p51 = scmp.ne.s32.totalorder %s37, %s38
      %p52 = scmp.eq.s32.totalorder %s16, 3
      %p53 = por %p51, %p52
      %p55 = scmp.ne.s32.totalorder %s38, %s54
      %p56 = scmp.eq.s32.totalorder %s16, 0
      %p57 = por %p55, %p56
      %s58 = ssub.s32 %s17, %s29
      %s59 = ssub.s32 %s18, %s25
      %s60 = sor.u32 %s58, %s59
      %p61 = scmp.eq.s32.totalorder %s60, 0
      %s63 = sadd.s32 %s62, 1
      %s64 = scalar_select %p61, %s62, %s63
      %p67 = pneg %p61
      %p68 = scmp.eq.s32.totalorder %s10, 3
      %p69 = por %p67, %p68
      %p70 = scmp.ne.s32.totalorder %s62, %s65
      %p71 = scmp.eq.s32.totalorder %s10, 0
      %p72 = por %p70, %p71
      %p73 = scmp.ne.s32.totalorder %s62, %s65
      %p74 = scmp.eq.s32.totalorder %s15, 3
      %p75 = por %p73, %p74
      %p76 = scmp.ne.s32.totalorder %s65, %s66
      %p77 = scmp.eq.s32.totalorder %s15, 0
      %p78 = por %p76, %p77
      %p79 = scmp.ne.s32.totalorder %s65, %s66
      %p80 = scmp.eq.s32.totalorder %s16, 3
      %p81 = por %p79, %p80
      %p83 = scmp.ne.s32.totalorder %s66, %s82
      %p84 = scmp.eq.s32.totalorder %s16, 0
      %p85 = por %p83, %p84
      %s87 = sadd.s32 %s86, 1
      %p90 = scmp.eq.s32.totalorder %s10, 3
      %p91 = scmp.ne.s32.totalorder %s86, %s88
      %p92 = scmp.eq.s32.totalorder %s10, 0
      %p93 = por %p91, %p92
      %p94 = scmp.ne.s32.totalorder %s86, %s88
      %p95 = scmp.eq.s32.totalorder %s15, 3
      %p96 = por %p94, %p95
      %p97 = scmp.ne.s32.totalorder %s88, %s89
      %p98 = scmp.eq.s32.totalorder %s15, 0
      %p99 = por %p97, %p98
      %p100 = scmp.ne.s32.totalorder %s88, %s89
      %p101 = scmp.eq.s32.totalorder %s16, 3
      %p102 = por %p100, %p101
      %p104 = scmp.ne.s32.totalorder %s89, %s103
      %p105 = scmp.eq.s32.totalorder %s16, 0
      %p106 = por %p104, %p105
      %s108 = sadd.s32 %s107, 1
      %p111 = scmp.eq.s32.totalorder %s10, 3
      %p112 = scmp.ne.s32.totalorder %s107, %s109
      %p113 = scmp.eq.s32.totalorder %s10, 0
      %p114 = por %p112, %p113
      %p115 = scmp.ne.s32.totalorder %s107, %s109
      %p116 = scmp.eq.s32.totalorder %s15, 3
      %p117 = por %p115, %p116
      %p118 = scmp.ne.s32.totalorder %s109, %s110
      %p119 = scmp.eq.s32.totalorder %s15, 0
      %p120 = por %p118, %p119
      %p121 = scmp.ne.s32.totalorder %s109, %s110
      %p122 = scmp.eq.s32.totalorder %s16, 3
      %p123 = por %p121, %p122
      %p125 = scmp.ne.s32.totalorder %s110, %s124
      %p126 = scmp.eq.s32.totalorder %s16, 0
      %p127 = por %p125, %p126
      %s128 = ssub.s32 %s17, %s29
      %s129 = ssub.s32 %s18, %s25
      %s130 = sor.u32 %s128, %s129
      %p131 = scmp.eq.s32.totalorder %s130, 0
      %s133 = sadd.s32 %s132, 1
      %s134 = scalar_select %p131, %s132, %s133
      %p137 = pneg %p131
      %p138 = scmp.eq.s32.totalorder %s10, 3
      %p139 = por %p137, %p138
      %p140 = scmp.ne.s32.totalorder %s132, %s135
      %p141 = scmp.eq.s32.totalorder %s10, 0
      %p142 = por %p140, %p141
      %p143 = scmp.ne.s32.totalorder %s132, %s135
      %p144 = scmp.eq.s32.totalorder %s15, 3
      %p145 = por %p143, %p144
      %p146 = scmp.ne.s32.totalorder %s135, %s136
      %p147 = scmp.eq.s32.totalorder %s15, 0
      %p148 = por %p146, %p147
      %p149 = scmp.ne.s32.totalorder %s135, %s136
      %p150 = scmp.eq.s32.totalorder %s16, 3
      %p151 = por %p149, %p150
      %p153 = scmp.ne.s32.totalorder %s136, %s152
      %p154 = scmp.eq.s32.totalorder %s16, 0
      %p155 = por %p153, %p154
      %p156 = scmp.le.s32.totalorder 1, %s10
      %p157 = scmp.lt.s32.totalorder %s10, 5
      %p158 = pnand %p156, %p157
      %p159 = pneg %p158
      // Predicated region
      $region9: #{representation_head.1} parent=5 // pred_check
        _
      $region10: #{representation_head.1} parent=5 // pred_check_branch
        %161 = sbr.rel (%p158) target = $region12
      $region11: #{representation_head.1} parent=5 // pred_region
        %s162 = ssub.s32 %s10, 1
        // Predicated region
        $region13: #{representation_head.1} parent=11 // pred_check
          %p163 = pneg %p99
        $region14: #{representation_head.1} parent=11 // pred_check_branch
          %165 = sbr.rel (%p163) target = $region16
        $region15: #{representation_head.1} parent=11 // pred_region
          _
        $region16: #{representation_head.1} parent=11 // pred_fallthru
          _
        // Predicated region
        $region17: #{representation_head.1} parent=11 // pred_check
          %p166 = pneg %p120
        $region18: #{representation_head.1} parent=11 // pred_check_branch
          %168 = sbr.rel (%p166) target = $region20
        $region19: #{representation_head.1} parent=11 // pred_region
          _
        $region20: #{representation_head.1} parent=11 // pred_fallthru
          _
      $region12: #{representation_head.1} parent=5 // pred_fallthru
        _
      %p169 = scmp.lt.s32.totalorder %s10, 4
      // Predicated region
      $region21: #{representation_head.1} parent=5 // pred_check
        %p170 = pneg %p169
      $region22: #{representation_head.1} parent=5 // pred_check_branch
        %172 = sbr.rel (%p170) target = $region24
      $region23: #{representation_head.1} parent=5 // pred_region
        // Predicated region
        $region25: #{representation_head.1} parent=23 // pred_check
          %p173 = pneg %p44
        $region26: #{representation_head.1} parent=23 // pred_check_branch
          %175 = sbr.rel (%p173) target = $region28
        $region27: #{representation_head.1} parent=23 // pred_region
          %p176 = scmp.lt.s32.totalorder %s17, 1
          %s177 = scalar_select %p176, %s17, 1
          %p178 = scmp.lt.s32.totalorder %s18, 1
          %s179 = scalar_select %p178, %s18, 1
          %s180 = smul.addr %s179, 16
          %s181 = smul.addr %s177, 32
          %s182 = sadd.s32 %s180, %s181
          %s183 = smul.addr %s182, 4
          %s184 = scalar_lea.vmem %s0, %s183
        $region28: #{representation_head.1} parent=23 // pred_fallthru
          _
        // Predicated region
        $region29: #{representation_head.1} parent=23 // pred_check
          %p185 = pneg %p72
        $region30: #{representation_head.1} parent=23 // pred_check_branch
          %187 = sbr.rel (%p185) target = $region32
        $region31: #{representation_head.1} parent=23 // pred_region
          %p188 = scmp.lt.s32.totalorder %s17, 1
          %s189 = scalar_select %p188, %s17, 1
          %p190 = scmp.lt.s32.totalorder %s18, 1
          %s191 = scalar_select %p190, %s18, 1
          %s192 = smul.addr %s191, 4
          %s193 = smul.addr %s189, 8
          %s194 = sadd.s32 %s192, %s193
          %s195 = smul.addr %s194, 4
          %s196 = scalar_lea.vmem %s1, %s195
        $region32: #{representation_head.1} parent=23 // pred_fallthru
          _
      $region24: #{representation_head.1} parent=5 // pred_fallthru
        _
      %p197 = scmp.le.s32.totalorder 1, %s10
      %p198 = scmp.lt.s32.totalorder %s10, 5
      %p199 = pnand %p197, %p198
      %p200 = pneg %p199
      // Predicated region
      $region33: #{representation_head.1} parent=5 // pred_check
        _
      $region34: #{representation_head.1} parent=5 // pred_check_branch
        %202 = sbr.rel (%p199) target = $region36
      $region35: #{representation_head.1} parent=5 // pred_region
        %s203 = ssub.s32 %s10, 1
        %p204 = scmp.lt.s32.totalorder %s19, 1
        %s205 = scalar_select %p204, %s19, 1
        %p206 = scmp.lt.s32.totalorder %s20, 1
        %s207 = scalar_select %p206, %s20, 1
        %s208 = smul.addr %s207, 16
        %s209 = smul.addr %s205, 32
        %s210 = sadd.s32 %s208, %s209
        %s211 = smul.addr %s210, 4
        %s212 = scalar_lea.vmem %s0, %s211
        %p213 = pneg %p50
        %p214 = pneg %p47
        %p215 = scmp.lt.s32.totalorder %s19, 1
        %s216 = scalar_select %p215, %s19, 1
        %p217 = scmp.lt.s32.totalorder %s20, 1
        %s218 = scalar_select %p217, %s20, 1
        %s219 = smul.addr %s218, 4
        %s220 = smul.addr %s216, 8
        %s221 = sadd.s32 %s219, %s220
        %s222 = smul.addr %s221, 4
        %s223 = scalar_lea.vmem %s1, %s222
        %p224 = pneg %p78
        %p225 = pneg %p75
        %p226 = pneg %p99
        %p227 = pneg %p96
        %p228 = pneg %p120
        %p229 = pneg %p117
        %p230 = pneg %p148
        %p231 = pneg %p145
        %s232 = sand.u32 %s135, 1
        %s233 = sand.u32 %s135, 1
        %s234 = smul.addr %s233, 128
        %s235 = scalar_lea.vmem [#allocation3], %s234
        %p236 = scmp.lt.s32.totalorder %s19, 1
        %s237 = scalar_select %p236, %s19, 1
        %p238 = scmp.lt.s32.totalorder %s20, 1
        %s239 = scalar_select %p238, %s20, 1
        %s240 = smul.addr %s239, 16
        %s241 = smul.addr %s237, 32
        %s242 = sadd.s32 %s240, %s241
        %s243 = smul.addr %s242, 4
        %s244 = scalar_lea.vmem %s0, %s243
        %p245 = scmp.lt.s32.totalorder %s19, 1
        %s246 = scalar_select %p245, %s19, 1
        %p247 = scmp.lt.s32.totalorder %s20, 1
        %s248 = scalar_select %p247, %s20, 1
        %s249 = smul.addr %s248, 4
        %s250 = smul.addr %s246, 8
        %s251 = sadd.s32 %s249, %s250
        %s252 = smul.addr %s251, 4
        %s253 = scalar_lea.vmem %s1, %s252
        %v255 = vld [vmem:[%s253] sm:$0xf]
        %v256 = vld [vmem:[%s253 + $0x4] sm:$0xf]
        %vm257 = vcmask 781312
        %258 = vst.msk [vmem:[#allocation2] sm:$0xf] %vm257, %v255
        %259 = vst.msk [vmem:[#allocation2 + $0x4] sm:$0xf] %vm257, %v256
        %v260 = vld [vmem:[%s244] sm:$0xf]
        %v261 = vld [vmem:[%s244 + $0x4] sm:$0xf]
        %v262 = vld [vmem:[%s244 + $0x8] sm:$0xf]
        %v263 = vld [vmem:[%s244 + $0xc] sm:$0xf]
        %v264 = vld [vmem:[%s244 + $0x10] sm:$0xf]
        %v265 = vld [vmem:[%s244 + $0x14] sm:$0xf]
        %v266 = vld [vmem:[%s244 + $0x18] sm:$0xf]
        %v267 = vld [vmem:[%s244 + $0x1c] sm:$0xf]
        %v268 = vld [vmem:[%s244 + $0x20] sm:$0xf]
        %v269 = vld [vmem:[%s244 + $0x24] sm:$0xf]
        %v270 = vld [vmem:[%s244 + $0x28] sm:$0xf]
        %v271 = vld [vmem:[%s244 + $0x2c] sm:$0xf]
        %v272 = vld [vmem:[%s244 + $0x30] sm:$0xf]
        %v273 = vld [vmem:[%s244 + $0x34] sm:$0xf]
        %v274 = vld [vmem:[%s244 + $0x38] sm:$0xf]
        %v275 = vld [vmem:[%s244 + $0x3c] sm:$0xf]
        %276 = vst.msk [vmem:[#allocation2 + $0x8] sm:$0xf] %vm257, %v260
        %277 = vst.msk [vmem:[#allocation2 + $0xc] sm:$0xf] %vm257, %v261
        %278 = vst.msk [vmem:[#allocation2 + $0x10] sm:$0xf] %vm257, %v262
        %279 = vst.msk [vmem:[#allocation2 + $0x14] sm:$0xf] %vm257, %v263
        %280 = vst.msk [vmem:[#allocation2 + $0x18] sm:$0xf] %vm257, %v264
        %281 = vst.msk [vmem:[#allocation2 + $0x1c] sm:$0xf] %vm257, %v265
        %282 = vst.msk [vmem:[#allocation2 + $0x20] sm:$0xf] %vm257, %v266
        %283 = vst.msk [vmem:[#allocation2 + $0x24] sm:$0xf] %vm257, %v267
        %284 = vst.msk [vmem:[#allocation2 + $0x28] sm:$0xf] %vm257, %v268
        %285 = vst.msk [vmem:[#allocation2 + $0x2c] sm:$0xf] %vm257, %v269
        %286 = vst.msk [vmem:[#allocation2 + $0x30] sm:$0xf] %vm257, %v270
        %287 = vst.msk [vmem:[#allocation2 + $0x34] sm:$0xf] %vm257, %v271
        %288 = vst.msk [vmem:[#allocation2 + $0x38] sm:$0xf] %vm257, %v272
        %289 = vst.msk [vmem:[#allocation2 + $0x3c] sm:$0xf] %vm257, %v273
        %290 = vst.msk [vmem:[#allocation2 + $0x40] sm:$0xf] %vm257, %v274
        %291 = vst.msk [vmem:[#allocation2 + $0x44] sm:$0xf] %vm257, %v275
        %v292 = vld [vmem:[%s253 + $0x8] sm:$0xf]
        %v293 = vld [vmem:[%s253 + $0xc] sm:$0xf]
        %294 = vst.msk [vmem:[#allocation2 + $0x48] sm:$0xf] %vm257, %v292
        %295 = vst.msk [vmem:[#allocation2 + $0x4c] sm:$0xf] %vm257, %v293
        %v296 = vld [vmem:[#allocation2] sm:$0xf]
        %v297 = vld [vmem:[#allocation2 + $0x4] sm:$0xf]
        %v298 = vld [vmem:[#allocation2 + $0x8] sm:$0xf]
        %v299 = vld [vmem:[#allocation2 + $0xc] sm:$0xf]
        %v300 = vld [vmem:[#allocation2 + $0x10] sm:$0xf]
        %v301 = vld [vmem:[#allocation2 + $0x14] sm:$0xf]
        %v302 = vld [vmem:[#allocation2 + $0x18] sm:$0xf]
        %v303 = vld [vmem:[#allocation2 + $0x1c] sm:$0xf]
        %v304 = vld [vmem:[#allocation2 + $0x20] sm:$0xf]
        %v305 = vld [vmem:[#allocation2 + $0x24] sm:$0xf]
        %v306 = vld [vmem:[#allocation2 + $0x28] sm:$0xf]
        %v307 = vld [vmem:[#allocation2 + $0x2c] sm:$0xf]
        %v308 = vld [vmem:[#allocation2 + $0x30] sm:$0xf]
        %v309 = vld [vmem:[#allocation2 + $0x34] sm:$0xf]
        %v310 = vld [vmem:[#allocation2 + $0x38] sm:$0xf]
        %v311 = vld [vmem:[#allocation2 + $0x3c] sm:$0xf]
        %v312 = vld [vmem:[%s2] sm:$0xf]
        %v313 = vld [vmem:[%s2 + $0x4] sm:$0xf]
        %v314 = vld [vmem:[%s2 + $0x8] sm:$0xf]
        %v315 = vld [vmem:[%s2 + $0xc] sm:$0xf]
        %v316 = vld [vmem:[%s2 + $0x10] sm:$0xf]
        %v317 = vld [vmem:[%s2 + $0x14] sm:$0xf]
        %v318 = vld [vmem:[%s2 + $0x18] sm:$0xf]
        %v319 = vld [vmem:[%s2 + $0x1c] sm:$0xf]
        %v320 = vld [vmem:[%s2 + $0x20] sm:$0xf]
        %v321 = vld [vmem:[%s2 + $0x24] sm:$0xf]
        %v322 = vld [vmem:[%s2 + $0x28] sm:$0xf]
        %v323 = vld [vmem:[%s2 + $0x2c] sm:$0xf]
        %v324 = vld [vmem:[#allocation2 + $0x40] sm:$0xf]
        %v325 = vld [vmem:[#allocation2 + $0x44] sm:$0xf]
        %s326 = scalar_lea.vmem %s2, 48
        %v327 = vld [vmem:[%s326] sm:$0xf]
        %v328 = vld [vmem:[%s326 + $0x4] sm:$0xf]
        %v329 = vld [vmem:[%s326 + $0x8] sm:$0xf]
        %v330 = vld [vmem:[%s326 + $0xc] sm:$0xf]
        %v331 = vld [vmem:[%s326 + $0x10] sm:$0xf]
        %v332 = vld [vmem:[%s326 + $0x14] sm:$0xf]
        %v333 = vld [vmem:[%s326 + $0x18] sm:$0xf]
        %v334 = vld [vmem:[%s326 + $0x1c] sm:$0xf]
        %v335 = vld [vmem:[%s326 + $0x20] sm:$0xf]
        %v336 = vld [vmem:[%s326 + $0x24] sm:$0xf]
        %v337 = vld [vmem:[%s326 + $0x28] sm:$0xf]
        %v338 = vld [vmem:[%s326 + $0x2c] sm:$0xf]
        %v355 = vunpack.c.l.b16 %v298
        %v356 = vunpack.c.l.b16 %v299
        %v357 = vunpack.c.l.b16 %v300
        %v358 = vunpack.c.l.b16 %v301
        %v359 = vunpack.c.l.b16 %v302
        %v360 = vunpack.c.l.b16 %v303
        %v361 = vunpack.c.l.b16 %v304
        %v362 = vunpack.c.l.b16 %v305
        %v363 = vunpack.c.l.b16 %v306
        %v364 = vunpack.c.l.b16 %v307
        %v365 = vunpack.c.l.b16 %v308
        %v366 = vunpack.c.l.b16 %v309
        %v367 = vunpack.c.l.b16 %v310
        %v368 = vunpack.c.l.b16 %v311
        %v369 = vunpack.c.l.b16 %v324
        %v370 = vunpack.c.l.b16 %v325
        %v371 = vpack.c.b16 %v356, %v355
        %v372 = vpack.c.b16 %v358, %v357
        %v373 = vpack.c.b16 %v360, %v359
        %v374 = vpack.c.b16 %v362, %v361
        %v375 = vpack.c.b16 %v364, %v363
        %v376 = vpack.c.b16 %v366, %v365
        %v377 = vpack.c.b16 %v368, %v367
        %v378 = vpack.c.b16 %v370, %v369
        %v391 = vunpack.c.l.b16 %v327
        %v392 = vunpack.c.l.b16 %v328
        %v393 = vunpack.c.l.b16 %v329
        %v394 = vunpack.c.l.b16 %v330
        %v395 = vunpack.c.l.b16 %v331
        %v396 = vunpack.c.l.b16 %v332
        %v397 = vunpack.c.l.b16 %v333
        %v398 = vunpack.c.l.b16 %v334
        %v399 = vunpack.c.l.b16 %v335
        %v400 = vunpack.c.l.b16 %v336
        %v401 = vunpack.c.l.b16 %v337
        %v402 = vunpack.c.l.b16 %v338
        %v403 = vpack.c.b16 %v392, %v391
        %v404 = vpack.c.b16 %v394, %v393
        %v405 = vpack.c.b16 %v396, %v395
        %v406 = vpack.c.b16 %v398, %v397
        %v407 = vpack.c.b16 %v400, %v399
        %v408 = vpack.c.b16 %v402, %v401
        %vm415 = vcmask 785408
        %v417 = vsel %vm415, %v371, 0
        %v420 = vsel %vm415, %v372, 0
        %v423 = vsel %vm415, %v373, 0
        %v426 = vsel %vm415, %v374, 0
        %v429 = vsel %vm415, %v375, 0
        %v432 = vsel %vm415, %v376, 0
        %v435 = vsel %vm415, %v377, 0
        %v438 = vsel %vm415, %v378, 0
        %440 = vmatprep.subr.bf16.mxu0 0
        %441 = vmatpush1.bf16.msra.mxu0 0
        %442 = vmatprep.subr.bf16.mxu0 0
        %443 = vmatpush1.bf16.msra.mxu0 0
        %444 = vmatprep.subr.bf16.mxu0 0
        %445 = vmatpush1.bf16.msra.mxu0 %v408
        %446 = vmatprep.subr.bf16.mxu0 0
        %447 = vmatpush1.bf16.msra.mxu0 %v407
        %448 = vmatprep.subr.bf16.mxu0 0
        %449 = vmatpush1.bf16.msra.mxu0 %v406
        %450 = vmatprep.subr.bf16.mxu0 0
        %451 = vmatpush1.bf16.msra.mxu0 %v405
        %452 = vmatprep.subr.bf16.mxu0 0
        %453 = vmatpush1.bf16.msra.mxu0 %v404
        %454 = vmatprep.subr.bf16.mxu0 0
        %455 = vmatpush1.bf16.msra.mxu0 %v403
        %456 = vmatprep.subr.bf16.mxu0 0
        %457 = vmatpush2.bf16.msra.mxu0 0
        %458 = vmatprep.subr.bf16.mxu0 0
        %459 = vmatpush2.bf16.msra.mxu0 0
        %460 = vmatprep.subr.bf16.mxu0 0
        %461 = vmatpush2.bf16.msra.mxu0 0
        %462 = vmatprep.subr.bf16.mxu0 0
        %463 = vmatpush2.bf16.msra.mxu0 0
        %464 = vmatprep.subr.bf16.mxu0 0
        %465 = vmatpush2.bf16.msra.mxu0 0
        %466 = vmatprep.subr.bf16.mxu0 0
        %467 = vmatpush2.bf16.msra.mxu0 0
        %468 = vmatprep.subr.bf16.mxu0 0
        %469 = vmatpush2.bf16.msra.mxu0 0
        %470 = vmatprep.subr.bf16.mxu0 0
        %471 = vmatpush2.bf16.msra.mxu0 0
        %472 = vmatprep.mubr.bf16.mxu0 0
        %473 = vmatmul.mubr.bf16.gmra.mxu0 %v417
        %v474 = vpop.f32.mrf.mxu0
        %v475 = vadd.f32 0.0, %v474
        %v476 = vpop.f32.mrf.mxu0
        %v477 = vpop.f32.mrf.mxu0
        %v478 = vadd.f32 0.0, %v477
        %v479 = vpop.f32.mrf.mxu0
        %480 = vmatprep.mubr.bf16.mxu0 0
        %481 = vmatmul.mubr.bf16.gmra.mxu0 %v420
        %v482 = vpop.f32.mrf.mxu0
        %v483 = vadd.f32 0.0, %v482
        %v484 = vpop.f32.mrf.mxu0
        %v485 = vpop.f32.mrf.mxu0
        %v486 = vadd.f32 0.0, %v485
        %v487 = vpop.f32.mrf.mxu0
        %488 = vmatprep.mubr.bf16.mxu0 0
        %489 = vmatmul.mubr.bf16.gmra.mxu0 %v423
        %v490 = vpop.f32.mrf.mxu0
        %v491 = vadd.f32 0.0, %v490
        %v492 = vpop.f32.mrf.mxu0
        %v493 = vpop.f32.mrf.mxu0
        %v494 = vadd.f32 0.0, %v493
        %v495 = vpop.f32.mrf.mxu0
        %496 = vmatprep.mubr.bf16.mxu0 0
        %497 = vmatmul.mubr.bf16.gmra.mxu0 %v426
        %v498 = vpop.f32.mrf.mxu0
        %v499 = vadd.f32 0.0, %v498
        %v500 = vpop.f32.mrf.mxu0
        %v501 = vpop.f32.mrf.mxu0
        %v502 = vadd.f32 0.0, %v501
        %v503 = vpop.f32.mrf.mxu0
        %504 = vmatprep.mubr.bf16.mxu0 0
        %505 = vmatmul.mubr.bf16.gmra.mxu0 %v429
        %v506 = vpop.f32.mrf.mxu0
        %v507 = vadd.f32 0.0, %v506
        %v508 = vpop.f32.mrf.mxu0
        %v509 = vpop.f32.mrf.mxu0
        %v510 = vadd.f32 0.0, %v509
        %v511 = vpop.f32.mrf.mxu0
        %512 = vmatprep.mubr.bf16.mxu0 0
        %513 = vmatmul.mubr.bf16.gmra.mxu0 %v432
        %v514 = vpop.f32.mrf.mxu0
        %v515 = vadd.f32 0.0, %v514
        %v516 = vpop.f32.mrf.mxu0
        %v517 = vpop.f32.mrf.mxu0
        %v518 = vadd.f32 0.0, %v517
        %v519 = vpop.f32.mrf.mxu0
        %520 = vmatprep.mubr.bf16.mxu0 0
        %521 = vmatmul.mubr.bf16.gmra.mxu0 %v435
        %v522 = vpop.f32.mrf.mxu0
        %v523 = vadd.f32 0.0, %v522
        %v524 = vpop.f32.mrf.mxu0
        %v525 = vpop.f32.mrf.mxu0
        %v526 = vadd.f32 0.0, %v525
        %v527 = vpop.f32.mrf.mxu0
        %528 = vmatprep.mubr.bf16.mxu0 0
        %529 = vmatmul.mubr.bf16.gmra.mxu0 %v438
        %v530 = vpop.f32.mrf.mxu0
        %v531 = vadd.f32 0.0, %v530
        %v532 = vpop.f32.mrf.mxu0
        %v533 = vpop.f32.mrf.mxu0
        %v534 = vadd.f32 0.0, %v533
        %v535 = vpop.f32.mrf.mxu0
        %536 = vdwg.mxu0
        %v539 = vunpack.c.l.b16 %v296
        %v540 = vunpack.c.l.b16 %v297
        %v541 = vpack.c.b16 %v540, %v539
        %v554 = vunpack.c.l.b16 %v312
        %v555 = vunpack.c.l.b16 %v313
        %v556 = vunpack.c.l.b16 %v314
        %v557 = vunpack.c.l.b16 %v315
        %v558 = vunpack.c.l.b16 %v316
        %v559 = vunpack.c.l.b16 %v317
        %v560 = vunpack.c.l.b16 %v318
        %v561 = vunpack.c.l.b16 %v319
        %v562 = vunpack.c.l.b16 %v320
        %v563 = vunpack.c.l.b16 %v321
        %v564 = vunpack.c.l.b16 %v322
        %v565 = vunpack.c.l.b16 %v323
        %v566 = vpack.c.b16 %v555, %v554
        %v567 = vpack.c.b16 %v557, %v556
        %v568 = vpack.c.b16 %v559, %v558
        %v569 = vpack.c.b16 %v561, %v560
        %v570 = vpack.c.b16 %v563, %v562
        %v571 = vpack.c.b16 %v565, %v564
        %v579 = vsel %vm415, %v541, 0
        %581 = vmatprep.subr.bf16.mxu0 0
        %582 = vmatpush1.bf16.msra.mxu0 0
        %583 = vmatprep.subr.bf16.mxu0 0
        %584 = vmatpush1.bf16.msra.mxu0 0
        %585 = vmatprep.subr.bf16.mxu0 0
        %586 = vmatpush1.bf16.msra.mxu0 %v571
        %587 = vmatprep.subr.bf16.mxu0 0
        %588 = vmatpush1.bf16.msra.mxu0 %v570
        %589 = vmatprep.subr.bf16.mxu0 0
        %590 = vmatpush1.bf16.msra.mxu0 %v569
        %591 = vmatprep.subr.bf16.mxu0 0
        %592 = vmatpush1.bf16.msra.mxu0 %v568
        %593 = vmatprep.subr.bf16.mxu0 0
        %594 = vmatpush1.bf16.msra.mxu0 %v567
        %595 = vmatprep.subr.bf16.mxu0 0
        %596 = vmatpush1.bf16.msra.mxu0 %v566
        %597 = vmatprep.subr.bf16.mxu0 0
        %598 = vmatpush2.bf16.msra.mxu0 0
        %599 = vmatprep.subr.bf16.mxu0 0
        %600 = vmatpush2.bf16.msra.mxu0 0
        %601 = vmatprep.subr.bf16.mxu0 0
        %602 = vmatpush2.bf16.msra.mxu0 0
        %603 = vmatprep.subr.bf16.mxu0 0
        %604 = vmatpush2.bf16.msra.mxu0 0
        %605 = vmatprep.subr.bf16.mxu0 0
        %606 = vmatpush2.bf16.msra.mxu0 0
        %607 = vmatprep.subr.bf16.mxu0 0
        %608 = vmatpush2.bf16.msra.mxu0 0
        %609 = vmatprep.subr.bf16.mxu0 0
        %610 = vmatpush2.bf16.msra.mxu0 0
        %611 = vmatprep.subr.bf16.mxu0 0
        %612 = vmatpush2.bf16.msra.mxu0 0
        %613 = vmatprep.mubr.bf16.mxu0 0
        %614 = vmatmul.mubr.bf16.gmra.mxu0 %v579
        %v615 = vpop.f32.mrf.mxu0
        %v616 = vadd.f32 %v475, %v615
        %v617 = vpop.f32.mrf.mxu0
        %v618 = vpop.f32.mrf.mxu0
        %v619 = vadd.f32 %v478, %v618
        %v620 = vpop.f32.mrf.mxu0
        %621 = vmatprep.mubr.bf16.mxu0 0
        %622 = vmatmul.mubr.bf16.gmra.mxu0 %v417
        %v623 = vpop.f32.mrf.mxu0
        %v624 = vadd.f32 %v483, %v623
        %v625 = vpop.f32.mrf.mxu0
        %v626 = vpop.f32.mrf.mxu0
        %v627 = vadd.f32 %v486, %v626
        %v628 = vpop.f32.mrf.mxu0
        %629 = vmatprep.mubr.bf16.mxu0 0
        %630 = vmatmul.mubr.bf16.gmra.mxu0 %v420
        %v631 = vpop.f32.mrf.mxu0
        %v632 = vadd.f32 %v491, %v631
        %v633 = vpop.f32.mrf.mxu0
        %v634 = vpop.f32.mrf.mxu0
        %v635 = vadd.f32 %v494, %v634
        %v636 = vpop.f32.mrf.mxu0
        %637 = vmatprep.mubr.bf16.mxu0 0
        %638 = vmatmul.mubr.bf16.gmra.mxu0 %v423
        %v639 = vpop.f32.mrf.mxu0
        %v640 = vadd.f32 %v499, %v639
        %v641 = vpop.f32.mrf.mxu0
        %v642 = vpop.f32.mrf.mxu0
        %v643 = vadd.f32 %v502, %v642
        %v644 = vpop.f32.mrf.mxu0
        %645 = vmatprep.mubr.bf16.mxu0 0
        %646 = vmatmul.mubr.bf16.gmra.mxu0 %v426
        %v647 = vpop.f32.mrf.mxu0
        %v648 = vadd.f32 %v507, %v647
        %v649 = vpop.f32.mrf.mxu0
        %v650 = vpop.f32.mrf.mxu0
        %v651 = vadd.f32 %v510, %v650
        %v652 = vpop.f32.mrf.mxu0
        %653 = vmatprep.mubr.bf16.mxu0 0
        %654 = vmatmul.mubr.bf16.gmra.mxu0 %v429
        %v655 = vpop.f32.mrf.mxu0
        %v656 = vadd.f32 %v515, %v655
        %v657 = vpop.f32.mrf.mxu0
        %v658 = vpop.f32.mrf.mxu0
        %v659 = vadd.f32 %v518, %v658
        %v660 = vpop.f32.mrf.mxu0
        %661 = vmatprep.mubr.bf16.mxu0 0
        %662 = vmatmul.mubr.bf16.gmra.mxu0 %v432
        %v663 = vpop.f32.mrf.mxu0
        %v664 = vadd.f32 %v523, %v663
        %v665 = vpop.f32.mrf.mxu0
        %v666 = vpop.f32.mrf.mxu0
        %v667 = vadd.f32 %v526, %v666
        %v668 = vpop.f32.mrf.mxu0
        %669 = vmatprep.mubr.bf16.mxu0 0
        %670 = vmatmul.mubr.bf16.gmra.mxu0 %v435
        %v671 = vpop.f32.mrf.mxu0
        %v672 = vadd.f32 %v531, %v671
        %v673 = vpop.f32.mrf.mxu0
        %v674 = vpop.f32.mrf.mxu0
        %v675 = vadd.f32 %v534, %v674
        %v676 = vpop.f32.mrf.mxu0
        %677 = vdwg.mxu0
        %v678 = vld [vmem:[#allocation2 + $0x10] sm:$0xf]
        %v679 = vld [vmem:[#allocation2 + $0x14] sm:$0xf]
        %v680 = vld [vmem:[#allocation2 + $0x18] sm:$0xf]
        %v681 = vld [vmem:[#allocation2 + $0x1c] sm:$0xf]
        %v682 = vld [vmem:[#allocation2 + $0x20] sm:$0xf]
        %v683 = vld [vmem:[#allocation2 + $0x24] sm:$0xf]
        %v684 = vld [vmem:[#allocation2 + $0x28] sm:$0xf]
        %v685 = vld [vmem:[#allocation2 + $0x2c] sm:$0xf]
        %v686 = vld [vmem:[#allocation2 + $0x30] sm:$0xf]
        %v687 = vld [vmem:[#allocation2 + $0x34] sm:$0xf]
        %v688 = vld [vmem:[#allocation2 + $0x38] sm:$0xf]
        %v689 = vld [vmem:[#allocation2 + $0x3c] sm:$0xf]
        %v690 = vld [vmem:[#allocation2 + $0x40] sm:$0xf]
        %v691 = vld [vmem:[#allocation2 + $0x44] sm:$0xf]
        %v692 = vld [vmem:[#allocation2 + $0x48] sm:$0xf]
        %v693 = vld [vmem:[#allocation2 + $0x4c] sm:$0xf]
        %s694 = scalar_lea.vmem %s2, 96
        %v695 = vld [vmem:[%s694] sm:$0xf]
        %v696 = vld [vmem:[%s694 + $0x4] sm:$0xf]
        %v697 = vld [vmem:[%s694 + $0x8] sm:$0xf]
        %v698 = vld [vmem:[%s694 + $0xc] sm:$0xf]
        %v699 = vld [vmem:[%s694 + $0x10] sm:$0xf]
        %v700 = vld [vmem:[%s694 + $0x14] sm:$0xf]
        %v701 = vld [vmem:[%s694 + $0x18] sm:$0xf]
        %v702 = vld [vmem:[%s694 + $0x1c] sm:$0xf]
        %v703 = vld [vmem:[%s694 + $0x20] sm:$0xf]
        %v704 = vld [vmem:[%s694 + $0x24] sm:$0xf]
        %v705 = vld [vmem:[%s694 + $0x28] sm:$0xf]
        %v706 = vld [vmem:[%s694 + $0x2c] sm:$0xf]
        %v723 = vunpack.c.l.b16 %v678
        %v724 = vunpack.c.l.b16 %v679
        %v725 = vunpack.c.l.b16 %v680
        %v726 = vunpack.c.l.b16 %v681
        %v727 = vunpack.c.l.b16 %v682
        %v728 = vunpack.c.l.b16 %v683
        %v729 = vunpack.c.l.b16 %v684
        %v730 = vunpack.c.l.b16 %v685
        %v731 = vunpack.c.l.b16 %v686
        %v732 = vunpack.c.l.b16 %v687
        %v733 = vunpack.c.l.b16 %v688
        %v734 = vunpack.c.l.b16 %v689
        %v735 = vunpack.c.l.b16 %v690
        %v736 = vunpack.c.l.b16 %v691
        %v737 = vunpack.c.l.b16 %v692
        %v738 = vunpack.c.l.b16 %v693
        %v739 = vpack.c.b16 %v724, %v723
        %v740 = vpack.c.b16 %v726, %v725
        %v741 = vpack.c.b16 %v728, %v727
        %v742 = vpack.c.b16 %v730, %v729
        %v743 = vpack.c.b16 %v732, %v731
        %v744 = vpack.c.b16 %v734, %v733
        %v745 = vpack.c.b16 %v736, %v735
        %v746 = vpack.c.b16 %v738, %v737
        %v759 = vunpack.c.l.b16 %v695
        %v760 = vunpack.c.l.b16 %v696
        %v761 = vunpack.c.l.b16 %v697
        %v762 = vunpack.c.l.b16 %v698
        %v763 = vunpack.c.l.b16 %v699
        %v764 = vunpack.c.l.b16 %v700
        %v765 = vunpack.c.l.b16 %v701
        %v766 = vunpack.c.l.b16 %v702
        %v767 = vunpack.c.l.b16 %v703
        %v768 = vunpack.c.l.b16 %v704
        %v769 = vunpack.c.l.b16 %v705
        %v770 = vunpack.c.l.b16 %v706
        %v771 = vpack.c.b16 %v760, %v759
        %v772 = vpack.c.b16 %v762, %v761
        %v773 = vpack.c.b16 %v764, %v763
        %v774 = vpack.c.b16 %v766, %v765
        %v775 = vpack.c.b16 %v768, %v767
        %v776 = vpack.c.b16 %v770, %v769
        %v784 = vsel %vm415, %v739, 0
        %v787 = vsel %vm415, %v740, 0
        %v790 = vsel %vm415, %v741, 0
        %v793 = vsel %vm415, %v742, 0
        %v796 = vsel %vm415, %v743, 0
        %v799 = vsel %vm415, %v744, 0
        %v802 = vsel %vm415, %v745, 0
        %v805 = vsel %vm415, %v746, 0
        %807 = vmatprep.subr.bf16.mxu0 0
        %808 = vmatpush1.bf16.msra.mxu0 0
        %809 = vmatprep.subr.bf16.mxu0 0
        %810 = vmatpush1.bf16.msra.mxu0 0
        %811 = vmatprep.subr.bf16.mxu0 0
        %812 = vmatpush1.bf16.msra.mxu0 %v776
        %813 = vmatprep.subr.bf16.mxu0 0
        %814 = vmatpush1.bf16.msra.mxu0 %v775
        %815 = vmatprep.subr.bf16.mxu0 0
        %816 = vmatpush1.bf16.msra.mxu0 %v774
        %817 = vmatprep.subr.bf16.mxu0 0
        %818 = vmatpush1.bf16.msra.mxu0 %v773
        %819 = vmatprep.subr.bf16.mxu0 0
        %820 = vmatpush1.bf16.msra.mxu0 %v772
        %821 = vmatprep.subr.bf16.mxu0 0
        %822 = vmatpush1.bf16.msra.mxu0 %v771
        %823 = vmatprep.subr.bf16.mxu0 0
        %824 = vmatpush2.bf16.msra.mxu0 0
        %825 = vmatprep.subr.bf16.mxu0 0
        %826 = vmatpush2.bf16.msra.mxu0 0
        %827 = vmatprep.subr.bf16.mxu0 0
        %828 = vmatpush2.bf16.msra.mxu0 0
        %829 = vmatprep.subr.bf16.mxu0 0
        %830 = vmatpush2.bf16.msra.mxu0 0
        %831 = vmatprep.subr.bf16.mxu0 0
        %832 = vmatpush2.bf16.msra.mxu0 0
        %833 = vmatprep.subr.bf16.mxu0 0
        %834 = vmatpush2.bf16.msra.mxu0 0
        %835 = vmatprep.subr.bf16.mxu0 0
        %836 = vmatpush2.bf16.msra.mxu0 0
        %837 = vmatprep.subr.bf16.mxu0 0
        %838 = vmatpush2.bf16.msra.mxu0 0
        %839 = vmatprep.mubr.bf16.mxu0 0
        %840 = vmatmul.mubr.bf16.gmra.mxu0 %v784
        %v841 = vpop.f32.mrf.mxu0
        %v842 = vadd.f32 0.0, %v841
        %v843 = vpop.f32.mrf.mxu0
        %v844 = vpop.f32.mrf.mxu0
        %v845 = vadd.f32 0.0, %v844
        %v846 = vpop.f32.mrf.mxu0
        %847 = vmatprep.mubr.bf16.mxu0 0
        %848 = vmatmul.mubr.bf16.gmra.mxu0 %v787
        %v849 = vpop.f32.mrf.mxu0
        %v850 = vadd.f32 0.0, %v849
        %v851 = vpop.f32.mrf.mxu0
        %v852 = vpop.f32.mrf.mxu0
        %v853 = vadd.f32 0.0, %v852
        %v854 = vpop.f32.mrf.mxu0
        %855 = vmatprep.mubr.bf16.mxu0 0
        %856 = vmatmul.mubr.bf16.gmra.mxu0 %v790
        %v857 = vpop.f32.mrf.mxu0
        %v858 = vadd.f32 0.0, %v857
        %v859 = vpop.f32.mrf.mxu0
        %v860 = vpop.f32.mrf.mxu0
        %v861 = vadd.f32 0.0, %v860
        %v862 = vpop.f32.mrf.mxu0
        %863 = vmatprep.mubr.bf16.mxu0 0
        %864 = vmatmul.mubr.bf16.gmra.mxu0 %v793
        %v865 = vpop.f32.mrf.mxu0
        %v866 = vadd.f32 0.0, %v865
        %v867 = vpop.f32.mrf.mxu0
        %v868 = vpop.f32.mrf.mxu0
        %v869 = vadd.f32 0.0, %v868
        %v870 = vpop.f32.mrf.mxu0
        %871 = vmatprep.mubr.bf16.mxu0 0
        %872 = vmatmul.mubr.bf16.gmra.mxu0 %v796
        %v873 = vpop.f32.mrf.mxu0
        %v874 = vadd.f32 0.0, %v873
        %v875 = vpop.f32.mrf.mxu0
        %v876 = vpop.f32.mrf.mxu0
        %v877 = vadd.f32 0.0, %v876
        %v878 = vpop.f32.mrf.mxu0
        %879 = vmatprep.mubr.bf16.mxu0 0
        %880 = vmatmul.mubr.bf16.gmra.mxu0 %v799
        %v881 = vpop.f32.mrf.mxu0
        %v882 = vadd.f32 0.0, %v881
        %v883 = vpop.f32.mrf.mxu0
        %v884 = vpop.f32.mrf.mxu0
        %v885 = vadd.f32 0.0, %v884
        %v886 = vpop.f32.mrf.mxu0
        %887 = vmatprep.mubr.bf16.mxu0 0
        %888 = vmatmul.mubr.bf16.gmra.mxu0 %v802
        %v889 = vpop.f32.mrf.mxu0
        %v890 = vadd.f32 0.0, %v889
        %v891 = vpop.f32.mrf.mxu0
        %v892 = vpop.f32.mrf.mxu0
        %v893 = vadd.f32 0.0, %v892
        %v894 = vpop.f32.mrf.mxu0
        %895 = vmatprep.mubr.bf16.mxu0 0
        %896 = vmatmul.mubr.bf16.gmra.mxu0 %v805
        %v897 = vpop.f32.mrf.mxu0
        %v898 = vadd.f32 0.0, %v897
        %v899 = vpop.f32.mrf.mxu0
        %v900 = vpop.f32.mrf.mxu0
        %v901 = vadd.f32 0.0, %v900
        %v902 = vpop.f32.mrf.mxu0
        %903 = vdwg.mxu0
        %v904 = vadd.f32 %v616, %v842
        %v905 = vadd.f32 %v619, %v845
        %v906 = vadd.f32 %v624, %v850
        %v907 = vadd.f32 %v627, %v853
        %v908 = vadd.f32 %v632, %v858
        %v909 = vadd.f32 %v635, %v861
        %v910 = vadd.f32 %v640, %v866
        %v911 = vadd.f32 %v643, %v869
        %v912 = vadd.f32 %v648, %v874
        %v913 = vadd.f32 %v651, %v877
        %v914 = vadd.f32 %v656, %v882
        %v915 = vadd.f32 %v659, %v885
        %v916 = vadd.f32 %v664, %v890
        %v917 = vadd.f32 %v667, %v893
        %v918 = vadd.f32 %v672, %v898
        %v919 = vadd.f32 %v675, %v901
        %v920 = vld [vmem:[%s3] sm:$0x1]
        %v922 = vlaneseq
        %v923 = vshrl.u32 %v922, 7
        %v924 = vsub.s32 0, %v923
        %v925 = vrot.slane %v920, %v924
        %v927 = vadd.f32 %v904, %v925
        %v928 = vadd.f32 %v905, %v925
        %v929 = vadd.f32 %v906, %v925
        %v930 = vadd.f32 %v907, %v925
        %v931 = vadd.f32 %v908, %v925
        %v932 = vadd.f32 %v909, %v925
        %v933 = vadd.f32 %v910, %v925
        %v934 = vadd.f32 %v911, %v925
        %v935 = vadd.f32 %v912, %v925
        %v936 = vadd.f32 %v913, %v925
        %v937 = vadd.f32 %v914, %v925
        %v938 = vadd.f32 %v915, %v925
        %v939 = vadd.f32 %v916, %v925
        %v940 = vadd.f32 %v917, %v925
        %v941 = vadd.f32 %v918, %v925
        %v942 = vadd.f32 %v919, %v925
        %943 = vxpose.xlu0.b32.start [1/16] %v927, 128
        %944 = vxpose.xlu0.b32.cont [2/16] %v928, 128
        %945 = vxpose.xlu0.b32.cont [3/16] %v929, 128
        %946 = vxpose.xlu0.b32.cont [4/16] %v930, 128
        %947 = vxpose.xlu0.b32.cont [5/16] %v931, 128
        %948 = vxpose.xlu0.b32.cont [6/16] %v932, 128
        %949 = vxpose.xlu0.b32.cont [7/16] %v933, 128
        %950 = vxpose.xlu0.b32.cont [8/16] %v934, 128
        %951 = vxpose.xlu0.b32.cont [9/16] %v935, 128
        %952 = vxpose.xlu0.b32.cont [10/16] %v936, 128
        %953 = vxpose.xlu0.b32.cont [11/16] %v937, 128
        %954 = vxpose.xlu0.b32.cont [12/16] %v938, 128
        %955 = vxpose.xlu0.b32.cont [13/16] %v939, 128
        %956 = vxpose.xlu0.b32.cont [14/16] %v940, 128
        %957 = vxpose.xlu0.b32.cont [15/16] %v941, 128
        %958 = vxpose.xlu0.b32.end [16/16] %v942, 128
        %v959 = vpop.trf.xlu0
        %v960 = vpop.trf.xlu0
        %v961 = vpop.trf.xlu0
        %v962 = vpop.trf.xlu0
        %v963 = vpop.trf.xlu0
        %v964 = vpop.trf.xlu0
        %v965 = vpop.trf.xlu0
        %v966 = vpop.trf.xlu0
        %v967 = vpop.trf.xlu0
        %v968 = vpop.trf.xlu0
        %v969 = vpop.trf.xlu0
        %v970 = vpop.trf.xlu0
        %v971 = vpop.trf.xlu0
        %v972 = vpop.trf.xlu0
        %v973 = vpop.trf.xlu0
        %v974 = vpop.trf.xlu0
        %975 = vst [vmem:[%s235] sm:$0xff] %v959
        %976 = vst [vmem:[%s235 + $0x8] sm:$0xff] %v960
        %977 = vst [vmem:[%s235 + $0x10] sm:$0xff] %v961
        %978 = vst [vmem:[%s235 + $0x18] sm:$0xff] %v962
        %979 = vst [vmem:[%s235 + $0x20] sm:$0xff] %v963
        %980 = vst [vmem:[%s235 + $0x28] sm:$0xff] %v964
        %981 = vst [vmem:[%s235 + $0x30] sm:$0xff] %v965
        %982 = vst [vmem:[%s235 + $0x38] sm:$0xff] %v966
        %983 = vst [vmem:[%s235 + $0x40] sm:$0xff] %v967
        %984 = vst [vmem:[%s235 + $0x48] sm:$0xff] %v968
        %985 = vst [vmem:[%s235 + $0x50] sm:$0xff] %v969
        %986 = vst [vmem:[%s235 + $0x58] sm:$0xff] %v970
        %987 = vst [vmem:[%s235 + $0x60] sm:$0xff] %v971
        %988 = vst [vmem:[%s235 + $0x68] sm:$0xff] %v972
        %989 = vst [vmem:[%s235 + $0x70] sm:$0xff] %v973
        %990 = vst [vmem:[%s235 + $0x78] sm:$0xff] %v974
        %s991 = sand.u32 %s135, 1
        %s992 = sand.u32 %s135, 1
        %s993 = smul.addr %s992, 128
        %s994 = scalar_lea.vmem [#allocation3], %s993
        // Predicated region
        $region37: #{representation_head.1} parent=35 // pred_check
          %p995 = pneg %p145
        $region38: #{representation_head.1} parent=35 // pred_check_branch
          %997 = sbr.rel (%p995) target = $region40
        $region39: #{representation_head.1} parent=35 // pred_region
          %s998 = smul.addr %s19, 32
          %s999 = sadd.s32 %s20, %s998
          %s1000 = smul.addr %s999, 8
          %s1001 = scalar_lea.vmem %s4, %s1000
          // Predicated region
          $region41: #{representation_head.1} parent=39 // pred_check
            _
          $region42: #{representation_head.1} parent=39 // pred_check_branch
            %1003 = sbr.rel (0) target = $region44
          $region43: #{representation_head.1} parent=39 // pred_region
            // Predicated region
            $region45: #{representation_head.1} parent=43 // pred_check
              _
            $region46: #{representation_head.1} parent=43 // pred_check_branch
              %1005 = sbr.rel (0) target = $region48
            $region47: #{representation_head.1} parent=43 // pred_region
              // Predicated region
              $region60: #{representation_head.1} parent=47 // pred_check
                _
              $region61: #{representation_head.1} parent=47 // pred_check_branch
                %1051 = sbr.rel (0) target = $region63
              $region62: #{representation_head.1} parent=47 // pred_region
                loop: start=0, step=1, limit=1
                $region64: #{representation_head.1} parent=62 // loop_pre_header
                  _
                $region65: #{representation_head.1} parent=62 // loop_header
                  %s1053 = sphi 0, %s1057
                  %p1054 = scmp.ge.s32.totalorder %s1053, 1
                  %s1058 = sphi %s994, %s994
                  %s1059 = sphi %s1001, %s1001
                $region66: #{representation_head.1} parent=62 // loop_header_branch
                  %1056 = sbr.rel (%p1054) target = $region70
                $region67: #{representation_head.1} parent=62 // loop_body
                  %v1060 = vld [vmem:[%s1058] sm:$0xff]
                  %1061 = vst [vmem:[%s1059] sm:$0xff] %v1060
                  %v1062 = vld [vmem:[%s1058 + $0x8] sm:$0xff]
                  %1063 = vst [vmem:[%s1059 + $0x10] sm:$0xff] %v1062
                  %v1064 = vld [vmem:[%s1058 + $0x10] sm:$0xff]
                  %1065 = vst [vmem:[%s1059 + $0x20] sm:$0xff] %v1064
                  %v1066 = vld [vmem:[%s1058 + $0x18] sm:$0xff]
                  %1067 = vst [vmem:[%s1059 + $0x30] sm:$0xff] %v1066
                  %v1068 = vld [vmem:[%s1058 + $0x20] sm:$0xff]
                  %1069 = vst [vmem:[%s1059 + $0x40] sm:$0xff] %v1068
                  %v1070 = vld [vmem:[%s1058 + $0x28] sm:$0xff]
                  %1071 = vst [vmem:[%s1059 + $0x50] sm:$0xff] %v1070
                  %v1072 = vld [vmem:[%s1058 + $0x30] sm:$0xff]
                  %1073 = vst [vmem:[%s1059 + $0x60] sm:$0xff] %v1072
                  %v1074 = vld [vmem:[%s1058 + $0x38] sm:$0xff]
                  %1075 = vst [vmem:[%s1059 + $0x70] sm:$0xff] %v1074
                  %v1076 = vld [vmem:[%s1058 + $0x40] sm:$0xff]
                  %1077 = vst [vmem:[%s1059 + $0x80] sm:$0xff] %v1076
                  %v1078 = vld [vmem:[%s1058 + $0x48] sm:$0xff]
                  %1079 = vst [vmem:[%s1059 + $0x90] sm:$0xff] %v1078
                  %v1080 = vld [vmem:[%s1058 + $0x50] sm:$0xff]
                  %1081 = vst [vmem:[%s1059 + $0xa0] sm:$0xff] %v1080
                  %v1082 = vld [vmem:[%s1058 + $0x58] sm:$0xff]
                  %1083 = vst [vmem:[%s1059 + $0xb0] sm:$0xff] %v1082
                  %v1084 = vld [vmem:[%s1058 + $0x60] sm:$0xff]
                  %1085 = vst [vmem:[%s1059 + $0xc0] sm:$0xff] %v1084
                  %v1086 = vld [vmem:[%s1058 + $0x68] sm:$0xff]
                  %1087 = vst [vmem:[%s1059 + $0xd0] sm:$0xff] %v1086
                  %v1088 = vld [vmem:[%s1058 + $0x70] sm:$0xff]
                  %1089 = vst [vmem:[%s1059 + $0xe0] sm:$0xff] %v1088
                  %v1090 = vld [vmem:[%s1058 + $0x78] sm:$0xff]
                  %1091 = vst [vmem:[%s1059 + $0xf0] sm:$0xff] %v1090
                $region68: #{representation_head.1} parent=62 // loop_footer
                  %s1057 = sadd.s32 1, %s1053
                $region69: #{representation_head.1} parent=62 // loop_footer_branch
                  %1052 = sbr.rel target = $region65
                $region70: #{representation_head.1} parent=62 // loop_exit
                  _
              $region63: #{representation_head.1} parent=47 // pred_fallthru
                _
              // Predicated region
              $region71: #{representation_head.1} parent=47 // pred_check
                _
              $region72: #{representation_head.1} parent=47 // pred_check_branch
                %1093 = sbr.rel target = $region74
              $region73: #{representation_head.1} parent=47 // pred_region
                _
              $region74: #{representation_head.1} parent=47 // pred_fallthru
                _
            $region48: #{representation_head.1} parent=43 // pred_fallthru
              _
            // Predicated region
            $region49: #{representation_head.1} parent=43 // pred_check
              _
            $region50: #{representation_head.1} parent=43 // pred_check_branch
              %1007 = sbr.rel target = $region52
            $region51: #{representation_head.1} parent=43 // pred_region
              %s1009 = ssub.s32 256, 1
              loop: start=0, step=1, limit=1
              $region53: #{representation_head.1} parent=51 // loop_pre_header
                _
              $region54: #{representation_head.1} parent=51 // loop_header
                %s1011 = sphi 0, %s1015
                %p1012 = scmp.ge.s32.totalorder %s1011, 1
                %s1016 = sphi %s994, %s994
                %s1017 = sphi %s1001, %s1001
              $region55: #{representation_head.1} parent=51 // loop_header_branch
                %1014 = sbr.rel (%p1012) target = $region59
              $region56: #{representation_head.1} parent=51 // loop_body
                %v1018 = vld [vmem:[%s1016] sm:%s1009]
                %1019 = vst [vmem:[%s1017] sm:%s1009] %v1018
                %v1020 = vld [vmem:[%s1016 + $0x8] sm:%s1009]
                %1021 = vst [vmem:[%s1017 + $0x10] sm:%s1009] %v1020
                %v1022 = vld [vmem:[%s1016 + $0x10] sm:%s1009]
                %1023 = vst [vmem:[%s1017 + $0x20] sm:%s1009] %v1022
                %v1024 = vld [vmem:[%s1016 + $0x18] sm:%s1009]
                %1025 = vst [vmem:[%s1017 + $0x30] sm:%s1009] %v1024
                %v1026 = vld [vmem:[%s1016 + $0x20] sm:%s1009]
                %1027 = vst [vmem:[%s1017 + $0x40] sm:%s1009] %v1026
                %v1028 = vld [vmem:[%s1016 + $0x28] sm:%s1009]
                %1029 = vst [vmem:[%s1017 + $0x50] sm:%s1009] %v1028
                %v1030 = vld [vmem:[%s1016 + $0x30] sm:%s1009]
                %1031 = vst [vmem:[%s1017 + $0x60] sm:%s1009] %v1030
                %v1032 = vld [vmem:[%s1016 + $0x38] sm:%s1009]
                %1033 = vst [vmem:[%s1017 + $0x70] sm:%s1009] %v1032
                %v1034 = vld [vmem:[%s1016 + $0x40] sm:%s1009]
                %1035 = vst [vmem:[%s1017 + $0x80] sm:%s1009] %v1034
                %v1036 = vld [vmem:[%s1016 + $0x48] sm:%s1009]
                %1037 = vst [vmem:[%s1017 + $0x90] sm:%s1009] %v1036
                %v1038 = vld [vmem:[%s1016 + $0x50] sm:%s1009]
                %1039 = vst [vmem:[%s1017 + $0xa0] sm:%s1009] %v1038
                %v1040 = vld [vmem:[%s1016 + $0x58] sm:%s1009]
                %1041 = vst [vmem:[%s1017 + $0xb0] sm:%s1009] %v1040
                %v1042 = vld [vmem:[%s1016 + $0x60] sm:%s1009]
                %1043 = vst [vmem:[%s1017 + $0xc0] sm:%s1009] %v1042
                %v1044 = vld [vmem:[%s1016 + $0x68] sm:%s1009]
                %1045 = vst [vmem:[%s1017 + $0xd0] sm:%s1009] %v1044
                %v1046 = vld [vmem:[%s1016 + $0x70] sm:%s1009]
                %1047 = vst [vmem:[%s1017 + $0xe0] sm:%s1009] %v1046
                %v1048 = vld [vmem:[%s1016 + $0x78] sm:%s1009]
                %1049 = vst [vmem:[%s1017 + $0xf0] sm:%s1009] %v1048
              $region57: #{representation_head.1} parent=51 // loop_footer
                %s1015 = sadd.s32 1, %s1011
              $region58: #{representation_head.1} parent=51 // loop_footer_branch
                %1010 = sbr.rel target = $region54
              $region59: #{representation_head.1} parent=51 // loop_exit
                _
            $region52: #{representation_head.1} parent=43 // pred_fallthru
              _
          $region44: #{representation_head.1} parent=39 // pred_fallthru
            _
          %1094 = vnop
        $region40: #{representation_head.1} parent=35 // pred_fallthru
          _
      $region36: #{representation_head.1} parent=5 // pred_fallthru
        _
      %p1095 = scmp.le.s32.totalorder 2, %s10
      // Predicated region
      $region75: #{representation_head.1} parent=5 // pred_check
        %p1096 = pneg %p1095
      $region76: #{representation_head.1} parent=5 // pred_check_branch
        %1098 = sbr.rel (%p1096) target = $region78
      $region77: #{representation_head.1} parent=5 // pred_region
        %s1099 = ssub.s32 %s10, 2
        // Predicated region
        $region79: #{representation_head.1} parent=77 // pred_check
          %p1100 = pneg %p151
        $region80: #{representation_head.1} parent=77 // pred_check_branch
          %1102 = sbr.rel (%p1100) target = $region82
        $region81: #{representation_head.1} parent=77 // pred_region
          %s1103 = sand.u32 %s136, 1
          %s1104 = sand.u32 %s136, 1
          %s1105 = smul.addr %s1104, 128
          %s1106 = scalar_lea.vmem [#allocation3], %s1105
        $region82: #{representation_head.1} parent=77 // pred_fallthru
          _
      $region78: #{representation_head.1} parent=5 // pred_fallthru
        _
    $region6: #{representation_head.1} parent=1 // loop_footer
      %s14 = sadd.s32 1, %s10
    $region7: #{representation_head.1} parent=1 // loop_footer_branch
      %9 = sbr.rel target = $region3
    $region8: #{representation_head.1} parent=1 // loop_exit
      _

</llo_original>
